<compile_context>
chip_gen: v5e
topology: v5e:2x2
jax: 0.10.0
libtpu: 0.0.40
codegen_flags: <defaults>
</compile_context>

<pallas_src>
import jax
import jax.numpy as jnp
from jax.experimental import pallas as pl
from jax.experimental.pallas import tpu as pltpu

# Logical (PyTorch) dims.
IN_DIM = 100
HID_DIM = 200
OUT_DIM = 100

# Lane-aligned padded dims (weights only; x / out stay at their logical width).
IN_PAD = 128
HID_PAD = 256
OUT_PAD = 128

# Default batch tile (sublane dim). ~1.6 MB of double-buffered x/out tiles in
# bf16 at 2048 rows — far under the scoped VMEM limit on every generation.
DEFAULT_BLOCK_B = 2048


def _round_up(n, m):
    return ((n + m - 1) // m) * m


def _generator_kernel(x_ref, w1_ref, b1_ref, w2_ref, b2_ref, o_ref, xpad_ref):
    # Stage the [TB, 100] input tile into a lane-aligned [TB, 128] VMEM buffer.
    # The zero-fill runs every step (cheap VMEM stores, co-issued with MXU
    # work) so it stays correct even when the "parallel" batch axis is split
    # across TensorCores (a one-time init gated on program_id==0 would be
    # skipped on the second core).
    xpad_ref[...] = jnp.zeros_like(xpad_ref)
    xpad_ref[:, :IN_DIM] = x_ref[...]

    # fc1: [TB, 128] @ [128, 256] on the MXU, f32 accumulation.
    h = jnp.dot(xpad_ref[...], w1_ref[...], preferred_element_type=jnp.float32)
    # Bias + ReLU kept in f32 on the VPU (v5e has no bf16 VALU).
    h = jnp.maximum(h + b1_ref[...], 0.0)

    # fc2: [TB, 256] @ [256, 128] on the MXU, f32 accumulation.
    y = jnp.dot(h.astype(w2_ref.dtype), w2_ref[...],
                preferred_element_type=jnp.float32)
    y = y + b2_ref[...]

    # Store only the 100 logical output lanes (output block last dim == 100),
    # avoiding any host-side slice pass over the result.
    o_ref[...] = y[:, :OUT_DIM].astype(o_ref.dtype)


def generator_forward(x, w1, b1, w2, b2, *, block_b=DEFAULT_BLOCK_B):
    """x: [B, 100]. Returns [B, 100] in the weights' storage dtype.

    w1: [128, 256], b1: [1, 256] (f32), w2: [256, 128], b2: [1, 128] (f32) —
    zero-padded outside the logical 100/200/100 region (see init_params).
    """
    B = x.shape[0]
    assert x.shape[1] == IN_DIM, f"expected [B, {IN_DIM}] input, got {x.shape}"

    compute_dtype = w1.dtype
    if x.dtype != compute_dtype:
        x = x.astype(compute_dtype)

    # Batch tile: multiple of 8, capped at block_b, and sized so B > tile gives
    # at least 2 grid steps (v7x megacore sees both TensorCores engaged).
    tb = min(block_b, _round_up(pl.cdiv(B, 2), 8))
    tb = max(8, (tb // 8) * 8)
    grid = (pl.cdiv(B, tb),)

    # Advisory cost hint so XLA schedules neighbours around this custom call.
    elem = jnp.dtype(compute_dtype).itemsize
    flops = 2 * B * (IN_PAD * HID_PAD + HID_PAD * OUT_PAD)
    bytes_accessed = (
        B * IN_DIM * elem                      # x read
        + B * OUT_DIM * elem                   # out write
        + w1.size * w1.dtype.itemsize + w2.size * w2.dtype.itemsize
        + b1.size * b1.dtype.itemsize + b2.size * b2.dtype.itemsize
    )

    return pl.pallas_call(
        _generator_kernel,
        out_shape=jax.ShapeDtypeStruct((B, OUT_DIM), compute_dtype),
        grid_spec=pltpu.PrefetchScalarGridSpec(
            num_scalar_prefetch=0,
            grid=grid,
            in_specs=[
                # x tile marches down the batch (last dim == full array dim,
                # so the 100-wide block is legal); weights/biases stay resident
                # in VMEM via constant index_maps.
                pl.BlockSpec((tb, IN_DIM), lambda i: (i, 0)),
                pl.BlockSpec((IN_PAD, HID_PAD), lambda i: (0, 0)),
                pl.BlockSpec((1, HID_PAD), lambda i: (0, 0)),
                pl.BlockSpec((HID_PAD, OUT_PAD), lambda i: (0, 0)),
                pl.BlockSpec((1, OUT_PAD), lambda i: (0, 0)),
            ],
            out_specs=pl.BlockSpec((tb, OUT_DIM), lambda i: (i, 0)),
            scratch_shapes=[pltpu.VMEM((tb, IN_PAD), compute_dtype)],
        ),
        compiler_params=pltpu.CompilerParams(
            dimension_semantics=("parallel",),   # independent batch rows
        ),
        cost_estimate=pl.CostEstimate(
            flops=flops, transcendentals=0, bytes_accessed=bytes_accessed
        ),
    )(x, w1, b1, w2, b2)


def init_params(key, dtype=jnp.bfloat16):
    """nn.Linear-style init, stored transposed and zero-padded to lane sizes.

    PyTorch: fc1.weight [200,100], fc1.bias [200]; fc2.weight [100,200],
    fc2.bias [100]. We store w as [in, out] padded to (128,256)/(256,128) in
    `dtype` (bf16 by default for HBM/MXU efficiency); biases stay f32 since
    the bias+ReLU epilogue runs in f32. Padding regions are exact zeros.
    """
    k1, k2, k3, k4 = jax.random.split(key, 4)
    lim1 = 1.0 / jnp.sqrt(jnp.float32(IN_DIM))
    lim2 = 1.0 / jnp.sqrt(jnp.float32(HID_DIM))

    w1_l = jax.random.uniform(k1, (IN_DIM, HID_DIM), jnp.float32, -lim1, lim1)
    b1_l = jax.random.uniform(k2, (1, HID_DIM), jnp.float32, -lim1, lim1)
    w2_l = jax.random.uniform(k3, (HID_DIM, OUT_DIM), jnp.float32, -lim2, lim2)
    b2_l = jax.random.uniform(k4, (1, OUT_DIM), jnp.float32, -lim2, lim2)

    w1 = jnp.zeros((IN_PAD, HID_PAD), dtype).at[:IN_DIM, :HID_DIM].set(
        w1_l.astype(dtype))
    b1 = jnp.zeros((1, HID_PAD), jnp.float32).at[:, :HID_DIM].set(b1_l)
    w2 = jnp.zeros((HID_PAD, OUT_PAD), dtype).at[:HID_DIM, :OUT_DIM].set(
        w2_l.astype(dtype))
    b2 = jnp.zeros((1, OUT_PAD), jnp.float32).at[:, :OUT_DIM].set(b2_l)
    return w1, b1, w2, b2


def reference_forward(x, w1, b1, w2, b2):
    """Pure-JAX f32 reference on the logical (unpadded) slices."""
    x = x.astype(jnp.float32)
    w1_l = w1[:IN_DIM, :HID_DIM].astype(jnp.float32)
    b1_l = b1[:, :HID_DIM].astype(jnp.float32)
    w2_l = w2[:HID_DIM, :OUT_DIM].astype(jnp.float32)
    b2_l = b2[:, :OUT_DIM].astype(jnp.float32)
    h = jnp.maximum(x @ w1_l + b1_l, 0.0)
    return h @ w2_l + b2_l


if __name__ == "__main__":
    key = jax.random.PRNGKey(0)
    kx, kp, kx2, kx3 = jax.random.split(key, 4)

    # --- bf16 default path (production configuration) -----------------------
    w1, b1, w2, b2 = init_params(kp)                       # bf16 weights
    B = 8
    x = jax.random.normal(kx, (B, IN_DIM), jnp.float32).astype(jnp.bfloat16)
    out = jax.block_until_ready(generator_forward(x, w1, b1, w2, b2))
    ref = reference_forward(x, w1, b1, w2, b2)
    assert out.shape == (B, OUT_DIM)
    assert jnp.allclose(out.astype(jnp.float32), ref, atol=5e-2, rtol=5e-2), \
        "mismatch vs reference (bf16, B=8)"

    # Non-multiple batch with a tiny tile: multi-step grid + masked edge block.
    B2 = 37
    x2 = jax.random.normal(kx2, (B2, IN_DIM), jnp.float32).astype(jnp.bfloat16)
    out2 = jax.block_until_ready(
        generator_forward(x2, w1, b1, w2, b2, block_b=16))
    ref2 = reference_forward(x2, w1, b1, w2, b2)
    assert out2.shape == (B2, OUT_DIM)
    assert jnp.allclose(out2.astype(jnp.float32), ref2, atol=5e-2, rtol=5e-2), \
        "mismatch vs reference (bf16, B=37)"

    # --- f32 path (matches the PyTorch reference semantics tightly) ---------
    w1f, b1f, w2f, b2f = init_params(kp, dtype=jnp.float32)
    B3 = 16
    x3 = jax.random.normal(kx3, (B3, IN_DIM), jnp.float32)
    out3 = jax.block_until_ready(generator_forward(x3, w1f, b1f, w2f, b2f))
    ref3 = reference_forward(x3, w1f, b1f, w2f, b2f)
    assert out3.shape == (B3, OUT_DIM)
    assert jnp.allclose(out3, ref3, atol=2e-3, rtol=2e-3), \
        "mismatch vs reference (f32, B=16)"

    print("KERNEL_OK")
</pallas_src>

<mosaic_0001>
module attributes {stable_mosaic.version = 11 : i64} {
  func.func @_generator_kernel(%arg0: i32, %arg1: memref<8x100xbf16, #tpu.memory_space<vmem>>, %arg2: memref<128x256xbf16, #tpu.memory_space<vmem>>, %arg3: memref<1x256xf32, #tpu.memory_space<vmem>>, %arg4: memref<256x128xbf16, #tpu.memory_space<vmem>>, %arg5: memref<1x128xf32, #tpu.memory_space<vmem>>, %arg6: memref<8x100xbf16, #tpu.memory_space<vmem>>, %arg7: memref<8x128xbf16, #tpu.memory_space<vmem>>) attributes {dimension_semantics = [#tpu.dimension_semantics<parallel>], iteration_bounds = array<i64: 1>, scalar_prefetch = 0 : i64, scratch_operands = 1 : i64, tpu.core_type = #tpu.core_type<tc>, window_params = [{transform_indices = @transform_0, window_bounds = array<i64: 8, 100>}, {pipeline_mode = #tpu.pipeline_mode<synchronous>, transform_indices = @transform_1, window_bounds = array<i64: 128, 256>}, {pipeline_mode = #tpu.pipeline_mode<synchronous>, transform_indices = @transform_2, window_bounds = array<i64: 1, 256>}, {pipeline_mode = #tpu.pipeline_mode<synchronous>, transform_indices = @transform_3, window_bounds = array<i64: 256, 128>}, {pipeline_mode = #tpu.pipeline_mode<synchronous>, transform_indices = @transform_4, window_bounds = array<i64: 1, 128>}, {transform_indices = @transform_5, window_bounds = array<i64: 8, 100>}]} {
    %cst = arith.constant 0.000000e+00 : bf16
    %0 = vector.broadcast %cst : bf16 to vector<8x128xbf16>
    %c0 = arith.constant 0 : index
    %c0_0 = arith.constant 0 : index
    %1 = vector.load %arg7[%c0, %c0_0] : memref<8x128xbf16, #tpu.memory_space<vmem>>, vector<8x128xbf16>
    tpu.vector_store %arg7[%c0, %c0_0], %0 {strides = array<i32>} : memref<8x128xbf16, #tpu.memory_space<vmem>>, vector<8x128xbf16>,
    %c0_1 = arith.constant 0 : index
    %c0_2 = arith.constant 0 : index
    %2 = vector.load %arg1[%c0_1, %c0_2] : memref<8x100xbf16, #tpu.memory_space<vmem>>, vector<8x100xbf16>
    %c0_3 = arith.constant 0 : index
    %c0_4 = arith.constant 0 : index
    %3 = vector.load %arg7[%c0_3, %c0_4] : memref<8x128xbf16, #tpu.memory_space<vmem>>, vector<8x100xbf16>
    tpu.vector_store %arg7[%c0_3, %c0_4], %2 {strides = array<i32>} : memref<8x128xbf16, #tpu.memory_space<vmem>>, vector<8x100xbf16>,
    %c0_5 = arith.constant 0 : index
    %c0_6 = arith.constant 0 : index
    %4 = vector.load %arg7[%c0_5, %c0_6] : memref<8x128xbf16, #tpu.memory_space<vmem>>, vector<8x128xbf16>
    %c0_7 = arith.constant 0 : index
    %c0_8 = arith.constant 0 : index
    %5 = vector.load %arg2[%c0_7, %c0_8] : memref<128x256xbf16, #tpu.memory_space<vmem>>, vector<128x256xbf16>
    %cst_9 = arith.constant dense<0.000000e+00> : vector<8x256xf32>
    %6 = tpu.matmul %4, %5, %cst_9 {dimension_numbers = #tpu.dot_dimension_numbers<[1], [0], [0], [1], [0, 0, 1, 1], [], []>} : vector<8x128xbf16>, vector<128x256xbf16>, vector<8x256xf32> -> vector<8x256xf32>
    %c0_10 = arith.constant 0 : index
    %c0_11 = arith.constant 0 : index
    %7 = vector.load %arg3[%c0_10, %c0_11] : memref<1x256xf32, #tpu.memory_space<vmem>>, vector<1x256xf32>
    %8 = vector.broadcast %7 : vector<1x256xf32> to vector<8x256xf32>
    %9 = arith.addf %6, %8 : vector<8x256xf32>
    %cst_12 = arith.constant 0.000000e+00 : f32
    %10 = vector.broadcast %cst_12 : f32 to vector<8x256xf32>
    %11 = arith.maximumf %9, %10 : vector<8x256xf32>
    %12 = arith.truncf %11 : vector<8x256xf32> to vector<8x256xbf16>
    %c0_13 = arith.constant 0 : index
    %c0_14 = arith.constant 0 : index
    %13 = vector.load %arg4[%c0_13, %c0_14] : memref<256x128xbf16, #tpu.memory_space<vmem>>, vector<256x128xbf16>
    %cst_15 = arith.constant dense<0.000000e+00> : vector<8x128xf32>
    %14 = tpu.matmul %12, %13, %cst_15 {dimension_numbers = #tpu.dot_dimension_numbers<[1], [0], [0], [1], [0, 0, 1, 1], [], []>} : vector<8x256xbf16>, vector<256x128xbf16>, vector<8x128xf32> -> vector<8x128xf32>
    %c0_16 = arith.constant 0 : index
    %c0_17 = arith.constant 0 : index
    %15 = vector.load %arg5[%c0_16, %c0_17] : memref<1x128xf32, #tpu.memory_space<vmem>>, vector<1x128xf32>
    %16 = vector.broadcast %15 : vector<1x128xf32> to vector<8x128xf32>
    %17 = arith.addf %14, %16 : vector<8x128xf32>
    %18 = vector.extract_strided_slice %17 {offsets = [0, 0], sizes = [8, 100], strides = [1, 1]} : vector<8x128xf32> to vector<8x100xf32>
    %19 = arith.truncf %18 : vector<8x100xf32> to vector<8x100xbf16>
    %c0_18 = arith.constant 0 : index
    %c0_19 = arith.constant 0 : index
    %20 = vector.load %arg6[%c0_18, %c0_19] : memref<8x100xbf16, #tpu.memory_space<vmem>>, vector<8x100xbf16>
    tpu.vector_store %arg6[%c0_18, %c0_19], %19 {strides = array<i32>} : memref<8x100xbf16, #tpu.memory_space<vmem>>, vector<8x100xbf16>,
    return
  }
  func.func @transform_0(%arg0: i32) -> (i32, i32) {
    %c0_i32 = arith.constant 0 : i32
    %c0_i32_0 = arith.constant 0 : i32
    return %arg0, %c0_i32 : i32, i32
  }
  func.func @transform_1(%arg0: i32) -> (i32, i32) {
    %c0_i32 = arith.constant 0 : i32
    %c0_i32_0 = arith.constant 0 : i32
    %c0_i32_1 = arith.constant 0 : i32
    return %c0_i32, %c0_i32_0 : i32, i32
  }
  func.func @transform_2(%arg0: i32) -> (i32, i32) {
    %c0_i32 = arith.constant 0 : i32
    %c0_i32_0 = arith.constant 0 : i32
    %c0_i32_1 = arith.constant 0 : i32
    return %c0_i32, %c0_i32_0 : i32, i32
  }
  func.func @transform_3(%arg0: i32) -> (i32, i32) {
    %c0_i32 = arith.constant 0 : i32
    %c0_i32_0 = arith.constant 0 : i32
    %c0_i32_1 = arith.constant 0 : i32
    return %c0_i32, %c0_i32_0 : i32, i32
  }
  func.func @transform_4(%arg0: i32) -> (i32, i32) {
    %c0_i32 = arith.constant 0 : i32
    %c0_i32_0 = arith.constant 0 : i32
    %c0_i32_1 = arith.constant 0 : i32
    return %c0_i32, %c0_i32_0 : i32, i32
  }
  func.func @transform_5(%arg0: i32) -> (i32, i32) {
    %c0_i32 = arith.constant 0 : i32
    %c0_i32_0 = arith.constant 0 : i32
    return %arg0, %c0_i32 : i32, i32
  }
}

</mosaic_0001>

<llo_original>
// kernel: tpu_custom_call.1
$region0: #{tpu_custom_call.1}
  #allocation0 [shape = 'u32[]', space=smem, size = 0x4, offset = 0x4, fixed_abs, tag = 'smem constant byte address 0x4 - core index']
  #allocation1 [shape = 'u32[72,128]{1,0:T(1,128)}', space=vmem, size = 0x9000, scoped, tag = 'internal scratch']
  #allocation2 [shape = 'bf16[8,128]{1,0:T(8,128)(2,1)}', space=vmem, size = 0x800, scoped, tag = 'scratch operand']
  %s0 = inlined_call_operand.hbm [shape: bf16[8,100], index: 0, kind: input, shape index: {}]
  %s1 = inlined_call_operand.hbm [shape: bf16[128,256], index: 1, kind: input, shape index: {}]
  %s2 = inlined_call_operand.hbm [shape: f32[1,256], index: 2, kind: input, shape index: {}]
  %s3 = inlined_call_operand.hbm [shape: bf16[256,128], index: 3, kind: input, shape index: {}]
  %s4 = inlined_call_operand.vmem [shape: f32[1,128], index: 4, kind: input, shape index: {}]
  %s5 = inlined_call_operand.hbm [shape: bf16[8,100], index: 5, kind: output, shape index: {}]
  %s6 = sld [smem:[#allocation0]]
  $region46: #{tpu_custom_call.1} parent=0
    _
  %s8 = ssub.s32 1, %s6
  %s9 = scalar_select 0, %s8, %s6
  $region1: #{tpu_custom_call.1} parent=0
    #allocation3 [shape = 'u8[2048]{0}', space=vmem, size = 0x800, scoped, tag = 'input window, operand 0, single buffered']
    #allocation4 [shape = 's32[1]{0}', space=sflag, size = 0x4, scoped, tag = 'scoped memory for tpu_custom_call.1']
    #allocation5 [shape = 's32[1]{0}', space=sflag, size = 0x4, scoped, tag = 'scoped memory for tpu_custom_call.1']
    #allocation6 [shape = 'u8[65536]{0}', space=vmem, size = 0x10000, scoped, tag = 'input window, operand 1, single buffered']
    #allocation7 [shape = 's32[1]{0}', space=sflag, size = 0x4, scoped, tag = 'scoped memory for tpu_custom_call.1']
    #allocation8 [shape = 'u8[1024]{0}', space=vmem, size = 0x400, scoped, tag = 'input window, operand 2, single buffered']
    #allocation9 [shape = 'u8[65536]{0}', space=vmem, size = 0x10000, scoped, tag = 'input window, operand 3, single buffered']
    #allocation10 [shape = 's32[1]{0}', space=sflag, size = 0x4, scoped, tag = 'scoped memory for tpu_custom_call.1']
    #allocation11 [shape = 'u8[2048]{0}', space=vmem, size = 0x800, scoped, tag = 'output window, operand 0, single buffered']
    %10 = vsyncpa [#allocation4], 0
    %11 = vsyncpa [#allocation7], 0
    %12 = vsyncpa [#allocation10], 0
    %13 = vsyncpa [#allocation5], 0
    // Predicated region
    $region2: #{tpu_custom_call.1} parent=1 // pred_check
      _
    $region3: #{tpu_custom_call.1} parent=1 // pred_check_branch
      %15 = sbr.rel (0) target = $region5
    $region4: #{tpu_custom_call.1} parent=1 // pred_region
      %17 = vsyncadd [#allocation4], 0
      %s19 = sshll.u32 %s0, 4
      %s20 = int_to_ptr.hbm [resolvable:$true] %s19
      %s21 = sshll.u32 [#allocation3], 4
      %s22 = int_to_ptr.vmem [resolvable:$true] %s21
      %24 = dma.hbm_to_vmem [thread:$0]  %s20, 64, %s22, [#allocation4]
    $region5: #{tpu_custom_call.1} parent=1 // pred_fallthru
      _
    // Predicated region
    $region6: #{tpu_custom_call.1} parent=1 // pred_check
      _
    $region7: #{tpu_custom_call.1} parent=1 // pred_check_branch
      %26 = sbr.rel (0) target = $region9
    $region8: #{tpu_custom_call.1} parent=1 // pred_region
      %28 = vsyncadd [#allocation7], 0
      %s29 = sshll.u32 %s1, 4
      %s30 = int_to_ptr.hbm [resolvable:$true] %s29
      %s31 = sshll.u32 [#allocation6], 4
      %s32 = int_to_ptr.vmem [resolvable:$true] %s31
      %37 = dma.hbm_to_vmem [thread:$0]  %s30, 2048, %s32, [#allocation7], 128, 128, 8
    $region9: #{tpu_custom_call.1} parent=1 // pred_fallthru
      _
    // Predicated region
    $region10: #{tpu_custom_call.1} parent=1 // pred_check
      _
    $region11: #{tpu_custom_call.1} parent=1 // pred_check_branch
      %39 = sbr.rel (0) target = $region13
    $region12: #{tpu_custom_call.1} parent=1 // pred_region
      %41 = vsyncadd [#allocation7], 0
      %s43 = sshll.u32 %s2, 4
      %s44 = int_to_ptr.hbm [resolvable:$true] %s43
      %s45 = sshll.u32 [#allocation8], 4
      %s46 = int_to_ptr.vmem [resolvable:$true] %s45
      %48 = dma.hbm_to_vmem [thread:$0]  %s44, 32, %s46, [#allocation7]
    $region13: #{tpu_custom_call.1} parent=1 // pred_fallthru
      _
    // Predicated region
    $region14: #{tpu_custom_call.1} parent=1 // pred_check
      _
    $region15: #{tpu_custom_call.1} parent=1 // pred_check_branch
      %50 = sbr.rel (0) target = $region17
    $region16: #{tpu_custom_call.1} parent=1 // pred_region
      %52 = vsyncadd [#allocation10], 0
      %s53 = sshll.u32 %s3, 4
      %s54 = int_to_ptr.hbm [resolvable:$true] %s53
      %s55 = sshll.u32 [#allocation9], 4
      %s56 = int_to_ptr.vmem [resolvable:$true] %s55
      %61 = dma.hbm_to_vmem [thread:$0]  %s54, 2048, %s56, [#allocation10], 64, 64, 4
    $region17: #{tpu_custom_call.1} parent=1 // pred_fallthru
      _
    // Predicated region
    $region18: #{tpu_custom_call.1} parent=1 // pred_check
      _
    $region19: #{tpu_custom_call.1} parent=1 // pred_check_branch
      %63 = sbr.rel (0) target = $region21
    $region20: #{tpu_custom_call.1} parent=1 // pred_region
      _
    $region21: #{tpu_custom_call.1} parent=1 // pred_fallthru
      _
    // Predicated region
    $region22: #{tpu_custom_call.1} parent=1 // pred_check
      _
    $region23: #{tpu_custom_call.1} parent=1 // pred_check_branch
      %65 = sbr.rel (0) target = $region25
    $region24: #{tpu_custom_call.1} parent=1 // pred_region
      %67 = dma.done [#allocation4], 64
    $region25: #{tpu_custom_call.1} parent=1 // pred_fallthru
      _
    // Predicated region
    $region26: #{tpu_custom_call.1} parent=1 // pred_check
      _
    $region27: #{tpu_custom_call.1} parent=1 // pred_check_branch
      %69 = sbr.rel (0) target = $region29
    $region28: #{tpu_custom_call.1} parent=1 // pred_region
      %71 = dma.done [#allocation7], 2048
    $region29: #{tpu_custom_call.1} parent=1 // pred_fallthru
      _
    // Predicated region
    $region30: #{tpu_custom_call.1} parent=1 // pred_check
      _
    $region31: #{tpu_custom_call.1} parent=1 // pred_check_branch
      %73 = sbr.rel (0) target = $region33
    $region32: #{tpu_custom_call.1} parent=1 // pred_region
      %75 = dma.done [#allocation7], 32
    $region33: #{tpu_custom_call.1} parent=1 // pred_fallthru
      _
    // Predicated region
    $region34: #{tpu_custom_call.1} parent=1 // pred_check
      _
    $region35: #{tpu_custom_call.1} parent=1 // pred_check_branch
      %77 = sbr.rel (0) target = $region37
    $region36: #{tpu_custom_call.1} parent=1 // pred_region
      %79 = dma.done [#allocation10], 2048
    $region37: #{tpu_custom_call.1} parent=1 // pred_fallthru
      _
    %81 = vst [vmem:[#allocation2] sm:$0xf] 0
    %v82 = vld [vmem:[#allocation3] sm:$0xf]
    %vm83 = vcmask 814080
    %84 = vst.msk [vmem:[#allocation2] sm:$0xf] %vm83, %v82
    %v85 = vld [vmem:[#allocation2] sm:$0xf]
    %v86 = vld [vmem:[#allocation6] sm:$0xff]
    %v87 = vld [vmem:[#allocation6 + $0x8] sm:$0xff]
    %v88 = vld [vmem:[#allocation6 + $0x10] sm:$0xff]
    %v89 = vld [vmem:[#allocation6 + $0x18] sm:$0xff]
    %v90 = vld [vmem:[#allocation6 + $0x20] sm:$0xff]
    %v91 = vld [vmem:[#allocation6 + $0x28] sm:$0xff]
    %v92 = vld [vmem:[#allocation6 + $0x30] sm:$0xff]
    %v93 = vld [vmem:[#allocation6 + $0x38] sm:$0xff]
    %v94 = vld [vmem:[#allocation6 + $0x40] sm:$0xff]
    %v95 = vld [vmem:[#allocation6 + $0x48] sm:$0xff]
    %v96 = vld [vmem:[#allocation6 + $0x50] sm:$0xff]
    %v97 = vld [vmem:[#allocation6 + $0x58] sm:$0xff]
    %v98 = vld [vmem:[#allocation6 + $0x60] sm:$0xff]
    %v99 = vld [vmem:[#allocation6 + $0x68] sm:$0xff]
    %v100 = vld [vmem:[#allocation6 + $0x70] sm:$0xff]
    %v101 = vld [vmem:[#allocation6 + $0x78] sm:$0xff]
    %v102 = vld [vmem:[#allocation8] sm:$0x3]
    %v104 = vperm.slane %v102, 0
    %v105 = vperm.slane %v102, 1
    %v124 = vunpack.c.l.b16 %v86
    %v125 = vunpack.c.h.b16 %v86
    %v126 = vunpack.c.l.b16 %v87
    %v127 = vunpack.c.h.b16 %v87
    %v128 = vunpack.c.l.b16 %v88
    %v129 = vunpack.c.h.b16 %v88
    %v130 = vunpack.c.l.b16 %v89
    %v131 = vunpack.c.h.b16 %v89
    %v132 = vunpack.c.l.b16 %v90
    %v133 = vunpack.c.h.b16 %v90
    %v134 = vunpack.c.l.b16 %v91
    %v135 = vunpack.c.h.b16 %v91
    %v136 = vunpack.c.l.b16 %v92
    %v137 = vunpack.c.h.b16 %v92
    %v138 = vunpack.c.l.b16 %v93
    %v139 = vunpack.c.h.b16 %v93
    %v140 = vunpack.c.l.b16 %v94
    %v141 = vunpack.c.h.b16 %v94
    %v142 = vunpack.c.l.b16 %v95
    %v143 = vunpack.c.h.b16 %v95
    %v144 = vunpack.c.l.b16 %v96
    %v145 = vunpack.c.h.b16 %v96
    %v146 = vunpack.c.l.b16 %v97
    %v147 = vunpack.c.h.b16 %v97
    %v148 = vunpack.c.l.b16 %v98
    %v149 = vunpack.c.h.b16 %v98
    %v150 = vunpack.c.l.b16 %v99
    %v151 = vunpack.c.h.b16 %v99
    %v152 = vunpack.c.l.b16 %v100
    %v153 = vunpack.c.h.b16 %v100
    %v154 = vunpack.c.l.b16 %v101
    %v155 = vunpack.c.h.b16 %v101
    %v156 = vpack.c.b16 %v126, %v124
    %v157 = vpack.c.b16 %v127, %v125
    %v158 = vpack.c.b16 %v130, %v128
    %v159 = vpack.c.b16 %v131, %v129
    %v160 = vpack.c.b16 %v134, %v132
    %v161 = vpack.c.b16 %v135, %v133
    %v162 = vpack.c.b16 %v138, %v136
    %v163 = vpack.c.b16 %v139, %v137
    %v164 = vpack.c.b16 %v142, %v140
    %v165 = vpack.c.b16 %v143, %v141
    %v166 = vpack.c.b16 %v146, %v144
    %v167 = vpack.c.b16 %v147, %v145
    %v168 = vpack.c.b16 %v150, %v148
    %v169 = vpack.c.b16 %v151, %v149
    %v170 = vpack.c.b16 %v154, %v152
    %v171 = vpack.c.b16 %v155, %v153
    %188 = vmatpush.bf16.msra.mxu0 %v170
    %189 = vmatpush.bf16.msra.mxu0 %v168
    %190 = vmatpush.bf16.msra.mxu0 %v166
    %191 = vmatpush.bf16.msra.mxu0 %v164
    %192 = vmatpush.bf16.msra.mxu0 %v162
    %193 = vmatpush.bf16.msra.mxu0 %v160
    %194 = vmatpush.bf16.msra.mxu0 %v158
    %195 = vmatpush.bf16.msra.mxu0 %v156
    %196 = vmatmul.bf16.gmra.mxu0 %v85
    %v197 = vpop.f32.mrf.mxu0
    %v198 = vadd.f32 %v104, %v197
    %v199 = vpop.f32.mrf.mxu0
    %200 = vdwg.mxu0
    %201 = vmatpush.bf16.msra.mxu0 %v171
    %202 = vmatpush.bf16.msra.mxu0 %v169
    %203 = vmatpush.bf16.msra.mxu0 %v167
    %204 = vmatpush.bf16.msra.mxu0 %v165
    %205 = vmatpush.bf16.msra.mxu0 %v163
    %206 = vmatpush.bf16.msra.mxu0 %v161
    %207 = vmatpush.bf16.msra.mxu0 %v159
    %208 = vmatpush.bf16.msra.mxu0 %v157
    %209 = vmatmul.bf16.gmra.mxu0 %v85
    %v210 = vpop.f32.mrf.mxu0
    %v211 = vadd.f32 %v105, %v210
    %v212 = vpop.f32.mrf.mxu0
    %213 = vdwg.mxu0
    %v214 = vmax.f32 %v198, 0.0
    %v215 = vmax.f32 %v211, 0.0
    %v216 = vpack.c.bf16 %v214, %v214
    %v217 = vpack.c.bf16 %v215, %v215
    %v218 = vld [vmem:[#allocation9] sm:$0xf]
    %v219 = vld [vmem:[#allocation9 + $0x4] sm:$0xf]
    %v220 = vld [vmem:[#allocation9 + $0x8] sm:$0xf]
    %v221 = vld [vmem:[#allocation9 + $0xc] sm:$0xf]
    %v222 = vld [vmem:[#allocation9 + $0x10] sm:$0xf]
    %v223 = vld [vmem:[#allocation9 + $0x14] sm:$0xf]
    %v224 = vld [vmem:[#allocation9 + $0x18] sm:$0xf]
    %v225 = vld [vmem:[#allocation9 + $0x1c] sm:$0xf]
    %v226 = vld [vmem:[#allocation9 + $0x20] sm:$0xf]
    %v227 = vld [vmem:[#allocation9 + $0x24] sm:$0xf]
    %v228 = vld [vmem:[#allocation9 + $0x28] sm:$0xf]
    %v229 = vld [vmem:[#allocation9 + $0x2c] sm:$0xf]
    %v230 = vld [vmem:[#allocation9 + $0x30] sm:$0xf]
    %v231 = vld [vmem:[#allocation9 + $0x34] sm:$0xf]
    %v232 = vld [vmem:[#allocation9 + $0x38] sm:$0xf]
    %v233 = vld [vmem:[#allocation9 + $0x3c] sm:$0xf]
    %v234 = vld [vmem:[#allocation9 + $0x40] sm:$0xf]
    %v235 = vld [vmem:[#allocation9 + $0x44] sm:$0xf]
    %v236 = vld [vmem:[#allocation9 + $0x48] sm:$0xf]
    %v237 = vld [vmem:[#allocation9 + $0x4c] sm:$0xf]
    %v238 = vld [vmem:[#allocation9 + $0x50] sm:$0xf]
    %v239 = vld [vmem:[#allocation9 + $0x54] sm:$0xf]
    %v240 = vld [vmem:[#allocation9 + $0x58] sm:$0xf]
    %v241 = vld [vmem:[#allocation9 + $0x5c] sm:$0xf]
    %v242 = vld [vmem:[#allocation9 + $0x60] sm:$0xf]
    %v243 = vld [vmem:[#allocation9 + $0x64] sm:$0xf]
    %v244 = vld [vmem:[#allocation9 + $0x68] sm:$0xf]
    %v245 = vld [vmem:[#allocation9 + $0x6c] sm:$0xf]
    %v246 = vld [vmem:[#allocation9 + $0x70] sm:$0xf]
    %v247 = vld [vmem:[#allocation9 + $0x74] sm:$0xf]
    %v248 = vld [vmem:[#allocation9 + $0x78] sm:$0xf]
    %v249 = vld [vmem:[#allocation9 + $0x7c] sm:$0xf]
    %v250 = vld [vmem:[%s4] sm:$0x1]
    %v252 = vperm.slane %v250, 0
    %v286 = vunpack.c.l.b16 %v218
    %v287 = vunpack.c.l.b16 %v219
    %v288 = vunpack.c.l.b16 %v220
    %v289 = vunpack.c.l.b16 %v221
    %v290 = vunpack.c.l.b16 %v222
    %v291 = vunpack.c.l.b16 %v223
    %v292 = vunpack.c.l.b16 %v224
    %v293 = vunpack.c.l.b16 %v225
    %v294 = vunpack.c.l.b16 %v226
    %v295 = vunpack.c.l.b16 %v227
    %v296 = vunpack.c.l.b16 %v228
    %v297 = vunpack.c.l.b16 %v229
    %v298 = vunpack.c.l.b16 %v230
    %v299 = vunpack.c.l.b16 %v231
    %v300 = vunpack.c.l.b16 %v232
    %v301 = vunpack.c.l.b16 %v233
    %v302 = vunpack.c.l.b16 %v234
    %v303 = vunpack.c.l.b16 %v235
    %v304 = vunpack.c.l.b16 %v236
    %v305 = vunpack.c.l.b16 %v237
    %v306 = vunpack.c.l.b16 %v238
    %v307 = vunpack.c.l.b16 %v239
    %v308 = vunpack.c.l.b16 %v240
    %v309 = vunpack.c.l.b16 %v241
    %v310 = vunpack.c.l.b16 %v242
    %v311 = vunpack.c.l.b16 %v243
    %v312 = vunpack.c.l.b16 %v244
    %v313 = vunpack.c.l.b16 %v245
    %v314 = vunpack.c.l.b16 %v246
    %v315 = vunpack.c.l.b16 %v247
    %v316 = vunpack.c.l.b16 %v248
    %v317 = vunpack.c.l.b16 %v249
    %v318 = vpack.c.b16 %v287, %v286
    %v319 = vpack.c.b16 %v289, %v288
    %v320 = vpack.c.b16 %v291, %v290
    %v321 = vpack.c.b16 %v293, %v292
    %v322 = vpack.c.b16 %v295, %v294
    %v323 = vpack.c.b16 %v297, %v296
    %v324 = vpack.c.b16 %v299, %v298
    %v325 = vpack.c.b16 %v301, %v300
    %v326 = vpack.c.b16 %v303, %v302
    %v327 = vpack.c.b16 %v305, %v304
    %v328 = vpack.c.b16 %v307, %v306
    %v329 = vpack.c.b16 %v309, %v308
    %v330 = vpack.c.b16 %v311, %v310
    %v331 = vpack.c.b16 %v313, %v312
    %v332 = vpack.c.b16 %v315, %v314
    %v333 = vpack.c.b16 %v317, %v316
    %350 = vmatpush.bf16.msra.mxu0 %v325
    %351 = vmatpush.bf16.msra.mxu0 %v324
    %352 = vmatpush.bf16.msra.mxu0 %v323
    %353 = vmatpush.bf16.msra.mxu0 %v322
    %354 = vmatpush.bf16.msra.mxu0 %v321
    %355 = vmatpush.bf16.msra.mxu0 %v320
    %356 = vmatpush.bf16.msra.mxu0 %v319
    %357 = vmatpush.bf16.msra.mxu0 %v318
    %358 = vmatmul.bf16.gmra.mxu0 %v216
    %v359 = vpop.f32.mrf.mxu0
    %v360 = vadd.f32 %v252, %v359
    %v361 = vpop.f32.mrf.mxu0
    %362 = vdwg.mxu0
    %363 = vmatpush.bf16.msra.mxu0 %v333
    %364 = vmatpush.bf16.msra.mxu0 %v332
    %365 = vmatpush.bf16.msra.mxu0 %v331
    %366 = vmatpush.bf16.msra.mxu0 %v330
    %367 = vmatpush.bf16.msra.mxu0 %v329
    %368 = vmatpush.bf16.msra.mxu0 %v328
    %369 = vmatpush.bf16.msra.mxu0 %v327
    %370 = vmatpush.bf16.msra.mxu0 %v326
    %371 = vmatmul.bf16.gmra.mxu0 %v217
    %v372 = vpop.f32.mrf.mxu0
    %v373 = vadd.f32 %v360, %v372
    %v374 = vpop.f32.mrf.mxu0
    %375 = vdwg.mxu0
    %v376 = vpack.c.bf16 %v373, %v373
    %377 = vst.msk [vmem:[#allocation11] sm:$0xf] %vm83, %v376
    // Predicated region
    $region38: #{tpu_custom_call.1} parent=1 // pred_check
      _
    $region39: #{tpu_custom_call.1} parent=1 // pred_check_branch
      %379 = sbr.rel (0) target = $region41
    $region40: #{tpu_custom_call.1} parent=1 // pred_region
      %381 = vsyncadd [#allocation5], 0
      %s383 = sshll.u32 [#allocation11], 4
      %s384 = int_to_ptr.vmem [resolvable:$true] %s383
      %s385 = sshll.u32 %s5, 4
      %s386 = int_to_ptr.hbm [resolvable:$true] %s385
      %388 = dma.vmem_to_hbm [thread:$0]  %s384, 64, %s386, [#allocation5]
    $region41: #{tpu_custom_call.1} parent=1 // pred_fallthru
      _
    // Predicated region
    $region42: #{tpu_custom_call.1} parent=1 // pred_check
      _
    $region43: #{tpu_custom_call.1} parent=1 // pred_check_branch
      %390 = sbr.rel (0) target = $region45
    $region44: #{tpu_custom_call.1} parent=1 // pred_region
      %392 = dma.done [#allocation5], 64
    $region45: #{tpu_custom_call.1} parent=1 // pred_fallthru
      _
    %393 = vsyncpa [#allocation4], 1
    %394 = vsyncpa [#allocation7], 1
    %395 = vsyncpa [#allocation10], 1
    %396 = vsyncpa [#allocation5], 1

</llo_original>
